<compile_context>
chip_gen: v5e
topology: v5e:2x2
jax: 0.10.0
libtpu: 0.0.40
codegen_flags: <defaults>
</compile_context>

<pallas_src>
import jax
import jax.numpy as jnp
from jax.experimental import pallas as pl
from jax.experimental.pallas import tpu as pltpu


def _ae_kernel(xT_ref,
               w1_ref, b1_ref, w2_ref, b2_ref,   # encoder
               w3_ref, b3_ref, w4_ref, b4_ref,   # decoder
               o_ref):
    """Fused AE forward on a (feature, batch_tile) lane-dense tile."""
    cdt = w1_ref.dtype                       # matmul input dtype (f32 or bf16)
    x = xT_ref[...].astype(cdt)              # (data_dim, Bt)

    # encoder: h^T = tanh(W1 @ x^T + b1), z^T = W2 @ h^T + b2
    h = jnp.tanh(jnp.dot(w1_ref[...], x,
                         preferred_element_type=jnp.float32) + b1_ref[...])
    z = jnp.dot(w2_ref[...], h.astype(cdt),
                preferred_element_type=jnp.float32) + b2_ref[...]

    # decoder: g^T = tanh(W3 @ z^T + b3), y^T = W4 @ g^T + b4
    g = jnp.tanh(jnp.dot(w3_ref[...], z.astype(cdt),
                         preferred_element_type=jnp.float32) + b3_ref[...])
    y = jnp.dot(w4_ref[...], g.astype(cdt),
                preferred_element_type=jnp.float32) + b4_ref[...]

    # sigmoid via jax.nn.sigmoid (EUP path, numerically safe for large |y|)
    o_ref[...] = jax.nn.sigmoid(y).astype(o_ref.dtype)


def _pick_batch_tile(B):
    """Lane-dense layout: batch is on the lane axis, so tiles must be a
    multiple of 128 (or the full batch).  Prefer >=2 grid steps so the
    BlockSpec pipeline overlaps DMA with compute (and v7x can shard across
    its 2 TensorCores), while keeping tiles <=512 rows so the double-buffered
    x/out tiles stay tiny relative to v7x's 64 MiB VMEM."""
    if B % 128 == 0:
        for t in (512, 384, 256, 128):
            if B % t == 0 and B // t >= 2:
                return t
    return B  # fall back to a single full-batch tile (block == full array dims)


def ae_basic_forward(x, params, *, batch_tile=None, use_bf16=False):
    """x: (B, data_dim) float32.
    params: PyTorch-layout weights (out_features, in_features) and biases
    (out_features, 1).  Returns (B, data_dim) in x.dtype."""
    B, data_dim = x.shape
    hidden_dim = params["w1"].shape[0]
    latent_dim = params["w2"].shape[0]
    assert params["w4"].shape[0] == data_dim

    if batch_tile is None:
        batch_tile = _pick_batch_tile(B)
    assert B % batch_tile == 0
    assert batch_tile == B or batch_tile % 128 == 0, (
        "batch_tile must be the full batch or a multiple of 128 (lane axis)")

    # Optional bf16 matmul inputs (MXU throughput + halved x/weight DMA bytes).
    # Biases, tanh and sigmoid stay in f32 (matters on v5e: no bf16 VPU/EUP).
    mm_dtype = jnp.bfloat16 if use_bf16 else x.dtype
    w1 = params["w1"].astype(mm_dtype)
    w2 = params["w2"].astype(mm_dtype)
    w3 = params["w3"].astype(mm_dtype)
    w4 = params["w4"].astype(mm_dtype)
    b1, b2, b3, b4 = params["b1"], params["b2"], params["b3"], params["b4"]

    xT = x.T.astype(mm_dtype)  # (data_dim, B): batch on the lane axis

    def resident(shape):
        # Full array, identical block index every grid step -> stays resident.
        # TODO(synk): at large hidden/data dims add pipeline_mode=pl.Buffered(1)
        # so resident weights are not double-buffered.
        return pl.BlockSpec(shape, lambda i: (0, 0))

    grid = (B // batch_tile,)
    outT = pl.pallas_call(
        _ae_kernel,
        out_shape=jax.ShapeDtypeStruct((data_dim, B), x.dtype),
        grid_spec=pltpu.PrefetchScalarGridSpec(
            num_scalar_prefetch=0,
            grid=grid,
            in_specs=[
                pl.BlockSpec((data_dim, batch_tile), lambda i: (0, i)),  # x^T
                resident((hidden_dim, data_dim)),    # w1
                resident((hidden_dim, 1)),           # b1
                resident((latent_dim, hidden_dim)),  # w2
                resident((latent_dim, 1)),           # b2
                resident((hidden_dim, latent_dim)),  # w3
                resident((hidden_dim, 1)),           # b3
                resident((data_dim, hidden_dim)),    # w4
                resident((data_dim, 1)),             # b4
            ],
            out_specs=pl.BlockSpec((data_dim, batch_tile), lambda i: (0, i)),
        ),
        compiler_params=pltpu.CompilerParams(
            dimension_semantics=("parallel",),       # batch tiles are independent
            vmem_limit_bytes=32 * 1024 * 1024,       # explicit, fits v5e/v6e/v7x
        ),
    )(xT, w1, b1, w2, b2, w3, b3, w4, b4)

    return outT.T


def init_params(key, data_dim, hidden_dim, latent_dim):
    """PyTorch nn.Linear-style init, native PyTorch layout:
    W: (out_features, in_features), b: (out_features, 1)."""
    def linear(key, fan_in, fan_out):
        kw, kb = jax.random.split(key)
        bound = 1.0 / jnp.sqrt(jnp.asarray(fan_in, jnp.float32))
        w = jax.random.uniform(kw, (fan_out, fan_in), jnp.float32, -bound, bound)
        b = jax.random.uniform(kb, (fan_out, 1), jnp.float32, -bound, bound)
        return w, b

    k1, k2, k3, k4 = jax.random.split(key, 4)
    w1, b1 = linear(k1, data_dim, hidden_dim)    # encoder[0]
    w2, b2 = linear(k2, hidden_dim, latent_dim)  # encoder[2]
    w3, b3 = linear(k3, latent_dim, hidden_dim)  # decoder[0]
    w4, b4 = linear(k4, hidden_dim, data_dim)    # decoder[2]
    return dict(w1=w1, b1=b1, w2=w2, b2=b2, w3=w3, b3=b3, w4=w4, b4=b4)


def ae_basic_ref(x, p):
    """Pure-JAX reference (standard row-major layout) for correctness check."""
    h = jnp.tanh(x @ p["w1"].T + p["b1"].T)
    z = h @ p["w2"].T + p["b2"].T
    g = jnp.tanh(z @ p["w3"].T + p["b3"].T)
    y = g @ p["w4"].T + p["b4"].T
    return jax.nn.sigmoid(y)


if __name__ == "__main__":
    # config: data_dim=16, hidden_dim=32, latent_dim=8
    data_dim, hidden_dim, latent_dim = 16, 32, 8

    key = jax.random.PRNGKey(0)
    kx, kp, kx2 = jax.random.split(key, 3)
    params = init_params(kp, data_dim, hidden_dim, latent_dim)

    # Small-batch check (single tile: block shape == full array shape).
    x = jax.random.normal(kx, (8, data_dim), jnp.float32)
    out = jax.block_until_ready(ae_basic_forward(x, params))
    assert out.shape == x.shape
    assert jnp.allclose(out, ae_basic_ref(x, params), atol=1e-5, rtol=1e-5)

    # Lane-aligned multi-step grid check (batch=256 -> 2 tiles of 128:
    # pipelined DMA/compute overlap, megacore-shardable on v7x).
    x2 = jax.random.normal(kx2, (256, data_dim), jnp.float32)
    out2 = jax.block_until_ready(ae_basic_forward(x2, params))
    assert out2.shape == x2.shape
    assert jnp.allclose(out2, ae_basic_ref(x2, params), atol=1e-5, rtol=1e-5)

    print("KERNEL_OK")
</pallas_src>

<mosaic_0001>
module attributes {stable_mosaic.version = 11 : i64} {
  func.func @_ae_kernel(%arg0: i32, %arg1: memref<16x8xf32, #tpu.memory_space<vmem>>, %arg2: memref<32x16xf32, #tpu.memory_space<vmem>>, %arg3: memref<32x1xf32, #tpu.memory_space<vmem>>, %arg4: memref<8x32xf32, #tpu.memory_space<vmem>>, %arg5: memref<8x1xf32, #tpu.memory_space<vmem>>, %arg6: memref<32x8xf32, #tpu.memory_space<vmem>>, %arg7: memref<32x1xf32, #tpu.memory_space<vmem>>, %arg8: memref<16x32xf32, #tpu.memory_space<vmem>>, %arg9: memref<16x1xf32, #tpu.memory_space<vmem>>, %arg10: memref<16x8xf32, #tpu.memory_space<vmem>>) attributes {dimension_semantics = [#tpu.dimension_semantics<parallel>], iteration_bounds = array<i64: 1>, scalar_prefetch = 0 : i64, scratch_operands = 0 : i64, tpu.core_type = #tpu.core_type<tc>, window_params = [{transform_indices = @transform_0, window_bounds = array<i64: 16, 8>}, {pipeline_mode = #tpu.pipeline_mode<synchronous>, transform_indices = @transform_1, window_bounds = array<i64: 32, 16>}, {pipeline_mode = #tpu.pipeline_mode<synchronous>, transform_indices = @transform_2, window_bounds = array<i64: 32, 1>}, {pipeline_mode = #tpu.pipeline_mode<synchronous>, transform_indices = @transform_3, window_bounds = array<i64: 8, 32>}, {pipeline_mode = #tpu.pipeline_mode<synchronous>, transform_indices = @transform_4, window_bounds = array<i64: 8, 1>}, {pipeline_mode = #tpu.pipeline_mode<synchronous>, transform_indices = @transform_5, window_bounds = array<i64: 32, 8>}, {pipeline_mode = #tpu.pipeline_mode<synchronous>, transform_indices = @transform_6, window_bounds = array<i64: 32, 1>}, {pipeline_mode = #tpu.pipeline_mode<synchronous>, transform_indices = @transform_7, window_bounds = array<i64: 16, 32>}, {pipeline_mode = #tpu.pipeline_mode<synchronous>, transform_indices = @transform_8, window_bounds = array<i64: 16, 1>}, {transform_indices = @transform_9, window_bounds = array<i64: 16, 8>}]} {
    %c0 = arith.constant 0 : index
    %c0_0 = arith.constant 0 : index
    %0 = vector.load %arg1[%c0, %c0_0] : memref<16x8xf32, #tpu.memory_space<vmem>>, vector<16x8xf32>
    %c0_1 = arith.constant 0 : index
    %c0_2 = arith.constant 0 : index
    %1 = vector.load %arg2[%c0_1, %c0_2] : memref<32x16xf32, #tpu.memory_space<vmem>>, vector<32x16xf32>
    %cst = arith.constant dense<0.000000e+00> : vector<32x8xf32>
    %2 = tpu.matmul %1, %0, %cst {dimension_numbers = #tpu.dot_dimension_numbers<[1], [0], [0], [1], [0, 0, 1, 1], [], []>} : vector<32x16xf32>, vector<16x8xf32>, vector<32x8xf32> -> vector<32x8xf32>
    %c0_3 = arith.constant 0 : index
    %c0_4 = arith.constant 0 : index
    %3 = vector.load %arg3[%c0_3, %c0_4] : memref<32x1xf32, #tpu.memory_space<vmem>>, vector<32x1xf32>
    %4 = vector.broadcast %3 : vector<32x1xf32> to vector<32x8xf32>
    %5 = arith.addf %2, %4 : vector<32x8xf32>
    %6 = math.tanh %5 : vector<32x8xf32>
    %c0_5 = arith.constant 0 : index
    %c0_6 = arith.constant 0 : index
    %7 = vector.load %arg4[%c0_5, %c0_6] : memref<8x32xf32, #tpu.memory_space<vmem>>, vector<8x32xf32>
    %cst_7 = arith.constant dense<0.000000e+00> : vector<8x8xf32>
    %8 = tpu.matmul %7, %6, %cst_7 {dimension_numbers = #tpu.dot_dimension_numbers<[1], [0], [0], [1], [0, 0, 1, 1], [], []>} : vector<8x32xf32>, vector<32x8xf32>, vector<8x8xf32> -> vector<8x8xf32>
    %c0_8 = arith.constant 0 : index
    %c0_9 = arith.constant 0 : index
    %9 = vector.load %arg5[%c0_8, %c0_9] : memref<8x1xf32, #tpu.memory_space<vmem>>, vector<8x1xf32>
    %10 = vector.broadcast %9 : vector<8x1xf32> to vector<8x8xf32>
    %11 = arith.addf %8, %10 : vector<8x8xf32>
    %c0_10 = arith.constant 0 : index
    %c0_11 = arith.constant 0 : index
    %12 = vector.load %arg6[%c0_10, %c0_11] : memref<32x8xf32, #tpu.memory_space<vmem>>, vector<32x8xf32>
    %cst_12 = arith.constant dense<0.000000e+00> : vector<32x8xf32>
    %13 = tpu.matmul %12, %11, %cst_12 {dimension_numbers = #tpu.dot_dimension_numbers<[1], [0], [0], [1], [0, 0, 1, 1], [], []>} : vector<32x8xf32>, vector<8x8xf32>, vector<32x8xf32> -> vector<32x8xf32>
    %c0_13 = arith.constant 0 : index
    %c0_14 = arith.constant 0 : index
    %14 = vector.load %arg7[%c0_13, %c0_14] : memref<32x1xf32, #tpu.memory_space<vmem>>, vector<32x1xf32>
    %15 = vector.broadcast %14 : vector<32x1xf32> to vector<32x8xf32>
    %16 = arith.addf %13, %15 : vector<32x8xf32>
    %17 = math.tanh %16 : vector<32x8xf32>
    %c0_15 = arith.constant 0 : index
    %c0_16 = arith.constant 0 : index
    %18 = vector.load %arg8[%c0_15, %c0_16] : memref<16x32xf32, #tpu.memory_space<vmem>>, vector<16x32xf32>
    %cst_17 = arith.constant dense<0.000000e+00> : vector<16x8xf32>
    %19 = tpu.matmul %18, %17, %cst_17 {dimension_numbers = #tpu.dot_dimension_numbers<[1], [0], [0], [1], [0, 0, 1, 1], [], []>} : vector<16x32xf32>, vector<32x8xf32>, vector<16x8xf32> -> vector<16x8xf32>
    %c0_18 = arith.constant 0 : index
    %c0_19 = arith.constant 0 : index
    %20 = vector.load %arg9[%c0_18, %c0_19] : memref<16x1xf32, #tpu.memory_space<vmem>>, vector<16x1xf32>
    %21 = vector.broadcast %20 : vector<16x1xf32> to vector<16x8xf32>
    %22 = arith.addf %19, %21 : vector<16x8xf32>
    %23 = arith.negf %22 : vector<16x8xf32>
    %24 = math.exp %23 : vector<16x8xf32>
    %cst_20 = arith.constant 1.000000e+00 : f32
    %25 = vector.broadcast %cst_20 : f32 to vector<16x8xf32>
    %26 = arith.addf %25, %24 : vector<16x8xf32>
    %27 = arith.divf %25, %26 : vector<16x8xf32>
    %c0_21 = arith.constant 0 : index
    %c0_22 = arith.constant 0 : index
    %28 = vector.load %arg10[%c0_21, %c0_22] : memref<16x8xf32, #tpu.memory_space<vmem>>, vector<16x8xf32>
    tpu.vector_store %arg10[%c0_21, %c0_22], %27 {strides = array<i32>} : memref<16x8xf32, #tpu.memory_space<vmem>>, vector<16x8xf32>,
    return
  }
  func.func @transform_0(%arg0: i32) -> (i32, i32) {
    %c0_i32 = arith.constant 0 : i32
    %c0_i32_0 = arith.constant 0 : i32
    return %c0_i32, %arg0 : i32, i32
  }
  func.func @transform_1(%arg0: i32) -> (i32, i32) {
    %c0_i32 = arith.constant 0 : i32
    %c0_i32_0 = arith.constant 0 : i32
    %c0_i32_1 = arith.constant 0 : i32
    return %c0_i32, %c0_i32_0 : i32, i32
  }
  func.func @transform_2(%arg0: i32) -> (i32, i32) {
    %c0_i32 = arith.constant 0 : i32
    %c0_i32_0 = arith.constant 0 : i32
    %c0_i32_1 = arith.constant 0 : i32
    return %c0_i32, %c0_i32_0 : i32, i32
  }
  func.func @transform_3(%arg0: i32) -> (i32, i32) {
    %c0_i32 = arith.constant 0 : i32
    %c0_i32_0 = arith.constant 0 : i32
    %c0_i32_1 = arith.constant 0 : i32
    return %c0_i32, %c0_i32_0 : i32, i32
  }
  func.func @transform_4(%arg0: i32) -> (i32, i32) {
    %c0_i32 = arith.constant 0 : i32
    %c0_i32_0 = arith.constant 0 : i32
    %c0_i32_1 = arith.constant 0 : i32
    return %c0_i32, %c0_i32_0 : i32, i32
  }
  func.func @transform_5(%arg0: i32) -> (i32, i32) {
    %c0_i32 = arith.constant 0 : i32
    %c0_i32_0 = arith.constant 0 : i32
    %c0_i32_1 = arith.constant 0 : i32
    return %c0_i32, %c0_i32_0 : i32, i32
  }
  func.func @transform_6(%arg0: i32) -> (i32, i32) {
    %c0_i32 = arith.constant 0 : i32
    %c0_i32_0 = arith.constant 0 : i32
    %c0_i32_1 = arith.constant 0 : i32
    return %c0_i32, %c0_i32_0 : i32, i32
  }
  func.func @transform_7(%arg0: i32) -> (i32, i32) {
    %c0_i32 = arith.constant 0 : i32
    %c0_i32_0 = arith.constant 0 : i32
    %c0_i32_1 = arith.constant 0 : i32
    return %c0_i32, %c0_i32_0 : i32, i32
  }
  func.func @transform_8(%arg0: i32) -> (i32, i32) {
    %c0_i32 = arith.constant 0 : i32
    %c0_i32_0 = arith.constant 0 : i32
    %c0_i32_1 = arith.constant 0 : i32
    return %c0_i32, %c0_i32_0 : i32, i32
  }
  func.func @transform_9(%arg0: i32) -> (i32, i32) {
    %c0_i32 = arith.constant 0 : i32
    %c0_i32_0 = arith.constant 0 : i32
    return %c0_i32, %arg0 : i32, i32
  }
}

</mosaic_0001>

<llo_original>
// kernel: tpu_custom_call.1
$region0: #{tpu_custom_call.1}
  #allocation0 [shape = 'u32[]', space=smem, size = 0x4, offset = 0x4, fixed_abs, tag = 'smem constant byte address 0x4 - core index']
  #allocation1 [shape = 'u32[72,128]{1,0:T(1,128)}', space=vmem, size = 0x9000, scoped, tag = 'internal scratch']
  %s0 = inlined_call_operand.vmem [shape: f32[16,8], index: 0, kind: input, shape index: {}]
  %s1 = inlined_call_operand.vmem [shape: f32[32,16], index: 1, kind: input, shape index: {}]
  %s2 = inlined_call_operand.vmem [shape: f32[32,1], index: 2, kind: input, shape index: {}]
  %s3 = inlined_call_operand.vmem [shape: f32[8,32], index: 3, kind: input, shape index: {}]
  %s4 = inlined_call_operand.vmem [shape: f32[8,1], index: 4, kind: input, shape index: {}]
  %s5 = inlined_call_operand.vmem [shape: f32[32,8], index: 5, kind: input, shape index: {}]
  %s6 = inlined_call_operand.vmem [shape: f32[32,1], index: 6, kind: input, shape index: {}]
  %s7 = inlined_call_operand.vmem [shape: f32[16,32], index: 7, kind: input, shape index: {}]
  %s8 = inlined_call_operand.vmem [shape: f32[16,1], index: 8, kind: input, shape index: {}]
  %s9 = inlined_call_operand.vmem [shape: f32[16,8], index: 9, kind: output, shape index: {}]
  %s10 = sld [smem:[#allocation0]]
  $region46: #{tpu_custom_call.1} parent=0
    _
  %s12 = ssub.s32 1, %s10
  %s13 = scalar_select 0, %s12, %s10
  // Predicated region
  $region2: #{tpu_custom_call.1} parent=0 // pred_check
    _
  $region3: #{tpu_custom_call.1} parent=0 // pred_check_branch
    %15 = sbr.rel (0) target = $region5
  $region4: #{tpu_custom_call.1} parent=0 // pred_region
    _
  $region5: #{tpu_custom_call.1} parent=0 // pred_fallthru
    _
  // Predicated region
  $region6: #{tpu_custom_call.1} parent=0 // pred_check
    _
  $region7: #{tpu_custom_call.1} parent=0 // pred_check_branch
    %17 = sbr.rel (0) target = $region9
  $region8: #{tpu_custom_call.1} parent=0 // pred_region
    _
  $region9: #{tpu_custom_call.1} parent=0 // pred_fallthru
    _
  // Predicated region
  $region10: #{tpu_custom_call.1} parent=0 // pred_check
    _
  $region11: #{tpu_custom_call.1} parent=0 // pred_check_branch
    %19 = sbr.rel (0) target = $region13
  $region12: #{tpu_custom_call.1} parent=0 // pred_region
    _
  $region13: #{tpu_custom_call.1} parent=0 // pred_fallthru
    _
  // Predicated region
  $region14: #{tpu_custom_call.1} parent=0 // pred_check
    _
  $region15: #{tpu_custom_call.1} parent=0 // pred_check_branch
    %21 = sbr.rel (0) target = $region17
  $region16: #{tpu_custom_call.1} parent=0 // pred_region
    _
  $region17: #{tpu_custom_call.1} parent=0 // pred_fallthru
    _
  // Predicated region
  $region18: #{tpu_custom_call.1} parent=0 // pred_check
    _
  $region19: #{tpu_custom_call.1} parent=0 // pred_check_branch
    %23 = sbr.rel (0) target = $region21
  $region20: #{tpu_custom_call.1} parent=0 // pred_region
    _
  $region21: #{tpu_custom_call.1} parent=0 // pred_fallthru
    _
  // Predicated region
  $region22: #{tpu_custom_call.1} parent=0 // pred_check
    _
  $region23: #{tpu_custom_call.1} parent=0 // pred_check_branch
    %25 = sbr.rel (0) target = $region25
  $region24: #{tpu_custom_call.1} parent=0 // pred_region
    _
  $region25: #{tpu_custom_call.1} parent=0 // pred_fallthru
    _
  // Predicated region
  $region26: #{tpu_custom_call.1} parent=0 // pred_check
    _
  $region27: #{tpu_custom_call.1} parent=0 // pred_check_branch
    %27 = sbr.rel (0) target = $region29
  $region28: #{tpu_custom_call.1} parent=0 // pred_region
    _
  $region29: #{tpu_custom_call.1} parent=0 // pred_fallthru
    _
  // Predicated region
  $region30: #{tpu_custom_call.1} parent=0 // pred_check
    _
  $region31: #{tpu_custom_call.1} parent=0 // pred_check_branch
    %29 = sbr.rel (0) target = $region33
  $region32: #{tpu_custom_call.1} parent=0 // pred_region
    _
  $region33: #{tpu_custom_call.1} parent=0 // pred_fallthru
    _
  // Predicated region
  $region34: #{tpu_custom_call.1} parent=0 // pred_check
    _
  $region35: #{tpu_custom_call.1} parent=0 // pred_check_branch
    %31 = sbr.rel (0) target = $region37
  $region36: #{tpu_custom_call.1} parent=0 // pred_region
    _
  $region37: #{tpu_custom_call.1} parent=0 // pred_fallthru
    _
  %v32 = vld [vmem:[%s0] sm:$0xff]
  %v33 = vld [vmem:[%s0 + $0x8] sm:$0xff]
  %v34 = vld [vmem:[%s1] sm:$0xff]
  %v35 = vld [vmem:[%s1 + $0x8] sm:$0xff]
  %v36 = vld [vmem:[%s1 + $0x10] sm:$0xff]
  %v37 = vld [vmem:[%s1 + $0x18] sm:$0xff]
  %v38 = vld [vmem:[%s2] sm:$0xff]
  %v39 = vld [vmem:[%s2 + $0x8] sm:$0xff]
  %v40 = vld [vmem:[%s2 + $0x10] sm:$0xff]
  %v41 = vld [vmem:[%s2 + $0x18] sm:$0xff]
  %43 = vset.pattern.permute.xlu0 0
  %44 = vperm.xlu0 %43, %v38
  %v45 = vpop.permute.xlu0 %44
  %48 = vset.pattern.permute.xlu0 0
  %49 = vperm.xlu0 %48, %v39
  %v50 = vpop.permute.xlu0 %49
  %53 = vset.pattern.permute.xlu0 0
  %54 = vperm.xlu0 %53, %v40
  %v55 = vpop.permute.xlu0 %54
  %58 = vset.pattern.permute.xlu0 0
  %59 = vperm.xlu0 %58, %v41
  %v60 = vpop.permute.xlu0 %59
  %vm62 = vcmask 130048
  %v64 = vsel %vm62, %v34, 0
  %v67 = vsel %vm62, %v35, 0
  %v70 = vsel %vm62, %v36, 0
  %v73 = vsel %vm62, %v37, 0
  %75 = vmatpush.msra.mxu0 0.0
  %76 = vmatpush.msra.mxu0 0.0
  %77 = vmatpush.msra.mxu0 0.0
  %78 = vmatpush.msra.mxu0 0.0
  %79 = vmatpush.msra.mxu0 0.0
  %80 = vmatpush.msra.mxu0 0.0
  %81 = vmatpush.msra.mxu0 0.0
  %82 = vmatpush.msra.mxu0 0.0
  %83 = vmatpush.msra.mxu0 0.0
  %84 = vmatpush.msra.mxu0 0.0
  %85 = vmatpush.msra.mxu0 0.0
  %86 = vmatpush.msra.mxu0 0.0
  %87 = vmatpush.msra.mxu0 0.0
  %88 = vmatpush.msra.mxu0 0.0
  %89 = vmatpush.msra.mxu0 %v33
  %90 = vmatpush.msra.mxu0 %v32
  %91 = vmatmul.f32.gmra.mxu0 %v64
  %v92 = vpop.f32.mrf.mxu0
  %v93 = vadd.f32 %v45, %v92
  %94 = vmatmul.f32.gmra.mxu0 %v67
  %v95 = vpop.f32.mrf.mxu0
  %v96 = vadd.f32 %v50, %v95
  %97 = vmatmul.f32.gmra.mxu0 %v70
  %v98 = vpop.f32.mrf.mxu0
  %v99 = vadd.f32 %v55, %v98
  %100 = vmatmul.f32.gmra.mxu0 %v73
  %v101 = vpop.f32.mrf.mxu0
  %v102 = vadd.f32 %v60, %v101
  %103 = vdwg.mxu0
  %v104 = vtanh.pop %v93
  %v105 = vtanh.pop %v96
  %v106 = vtanh.pop %v99
  %v107 = vtanh.pop %v102
  %v108 = vld [vmem:[%s3] sm:$0xff]
  %v109 = vld [vmem:[%s4] sm:$0xff]
  %111 = vset.pattern.permute.xlu0 0
  %112 = vperm.xlu0 %111, %v109
  %v113 = vpop.permute.xlu0 %112
  %vm115 = vcmask 261120
  %v117 = vsel %vm115, %v108, 0
  %119 = vmatpush.msra.mxu0 0.0
  %120 = vmatpush.msra.mxu0 0.0
  %121 = vmatpush.msra.mxu0 0.0
  %122 = vmatpush.msra.mxu0 0.0
  %123 = vmatpush.msra.mxu0 0.0
  %124 = vmatpush.msra.mxu0 0.0
  %125 = vmatpush.msra.mxu0 0.0
  %126 = vmatpush.msra.mxu0 0.0
  %127 = vmatpush.msra.mxu0 0.0
  %128 = vmatpush.msra.mxu0 0.0
  %129 = vmatpush.msra.mxu0 0.0
  %130 = vmatpush.msra.mxu0 0.0
  %131 = vmatpush.msra.mxu0 %v107
  %132 = vmatpush.msra.mxu0 %v106
  %133 = vmatpush.msra.mxu0 %v105
  %134 = vmatpush.msra.mxu0 %v104
  %135 = vmatmul.f32.gmra.mxu0 %v117
  %v136 = vpop.f32.mrf.mxu0
  %v137 = vadd.f32 %v113, %v136
  %138 = vdwg.mxu0
  %v139 = vld [vmem:[%s5] sm:$0xff]
  %v140 = vld [vmem:[%s5 + $0x8] sm:$0xff]
  %v141 = vld [vmem:[%s5 + $0x10] sm:$0xff]
  %v142 = vld [vmem:[%s5 + $0x18] sm:$0xff]
  %v143 = vld [vmem:[%s6] sm:$0xff]
  %v144 = vld [vmem:[%s6 + $0x8] sm:$0xff]
  %v145 = vld [vmem:[%s6 + $0x10] sm:$0xff]
  %v146 = vld [vmem:[%s6 + $0x18] sm:$0xff]
  %148 = vset.pattern.permute.xlu0 0
  %149 = vperm.xlu0 %148, %v143
  %v150 = vpop.permute.xlu0 %149
  %153 = vset.pattern.permute.xlu0 0
  %154 = vperm.xlu0 %153, %v144
  %v155 = vpop.permute.xlu0 %154
  %158 = vset.pattern.permute.xlu0 0
  %159 = vperm.xlu0 %158, %v145
  %v160 = vpop.permute.xlu0 %159
  %163 = vset.pattern.permute.xlu0 0
  %164 = vperm.xlu0 %163, %v146
  %v165 = vpop.permute.xlu0 %164
  %vm167 = vcmask 64512
  %v169 = vsel %vm167, %v139, 0
  %v172 = vsel %vm167, %v140, 0
  %v175 = vsel %vm167, %v141, 0
  %v178 = vsel %vm167, %v142, 0
  %180 = vmatpush.msra.mxu0 0.0
  %181 = vmatpush.msra.mxu0 0.0
  %182 = vmatpush.msra.mxu0 0.0
  %183 = vmatpush.msra.mxu0 0.0
  %184 = vmatpush.msra.mxu0 0.0
  %185 = vmatpush.msra.mxu0 0.0
  %186 = vmatpush.msra.mxu0 0.0
  %187 = vmatpush.msra.mxu0 0.0
  %188 = vmatpush.msra.mxu0 0.0
  %189 = vmatpush.msra.mxu0 0.0
  %190 = vmatpush.msra.mxu0 0.0
  %191 = vmatpush.msra.mxu0 0.0
  %192 = vmatpush.msra.mxu0 0.0
  %193 = vmatpush.msra.mxu0 0.0
  %194 = vmatpush.msra.mxu0 0.0
  %195 = vmatpush.msra.mxu0 %v137
  %196 = vmatmul.f32.gmra.mxu0 %v169
  %v197 = vpop.f32.mrf.mxu0
  %v198 = vadd.f32 %v150, %v197
  %199 = vmatmul.f32.gmra.mxu0 %v172
  %v200 = vpop.f32.mrf.mxu0
  %v201 = vadd.f32 %v155, %v200
  %202 = vmatmul.f32.gmra.mxu0 %v175
  %v203 = vpop.f32.mrf.mxu0
  %v204 = vadd.f32 %v160, %v203
  %205 = vmatmul.f32.gmra.mxu0 %v178
  %v206 = vpop.f32.mrf.mxu0
  %v207 = vadd.f32 %v165, %v206
  %208 = vdwg.mxu0
  %v209 = vtanh.pop %v198
  %v210 = vtanh.pop %v201
  %v211 = vtanh.pop %v204
  %v212 = vtanh.pop %v207
  %v213 = vld [vmem:[%s7] sm:$0xff]
  %v214 = vld [vmem:[%s7 + $0x8] sm:$0xff]
  %v215 = vld [vmem:[%s8] sm:$0xff]
  %v216 = vld [vmem:[%s8 + $0x8] sm:$0xff]
  %218 = vset.pattern.permute.xlu0 0
  %219 = vperm.xlu0 %218, %v215
  %v220 = vpop.permute.xlu0 %219
  %223 = vset.pattern.permute.xlu0 0
  %224 = vperm.xlu0 %223, %v216
  %v225 = vpop.permute.xlu0 %224
  %v228 = vsel %vm115, %v213, 0
  %v231 = vsel %vm115, %v214, 0
  %233 = vmatpush.msra.mxu0 0.0
  %234 = vmatpush.msra.mxu0 0.0
  %235 = vmatpush.msra.mxu0 0.0
  %236 = vmatpush.msra.mxu0 0.0
  %237 = vmatpush.msra.mxu0 0.0
  %238 = vmatpush.msra.mxu0 0.0
  %239 = vmatpush.msra.mxu0 0.0
  %240 = vmatpush.msra.mxu0 0.0
  %241 = vmatpush.msra.mxu0 0.0
  %242 = vmatpush.msra.mxu0 0.0
  %243 = vmatpush.msra.mxu0 0.0
  %244 = vmatpush.msra.mxu0 0.0
  %245 = vmatpush.msra.mxu0 %v212
  %246 = vmatpush.msra.mxu0 %v211
  %247 = vmatpush.msra.mxu0 %v210
  %248 = vmatpush.msra.mxu0 %v209
  %249 = vmatmul.f32.gmra.mxu0 %v228
  %v250 = vpop.f32.mrf.mxu0
  %v251 = vadd.f32 %v220, %v250
  %252 = vmatmul.f32.gmra.mxu0 %v231
  %v253 = vpop.f32.mrf.mxu0
  %v254 = vadd.f32 %v225, %v253
  %255 = vdwg.mxu0
  %v256 = vxor.u32 %v251, 2147483648
  %v257 = vxor.u32 %v254, 2147483648
  %v258 = vmul.f32 %v256, 1.442695
  %v259 = vpow.pop %v258
  %v260 = vmul.f32 %v257, 1.442695
  %v261 = vpow.pop %v260
  %v262 = vadd.f32 %v259, 1.0
  %v263 = vadd.f32 %v261, 1.0
  %v264 = vrcp.pop %v262
  %v265 = vmul.f32 %v262, %v264
  %v266 = vsub.f32 1.0, %v265
  %v267 = vmul.f32 %v264, %v266
  %v268 = vadd.f32 %v264, %v267
  %vm269 = vweird.f32 %v262
  %vm270 = vweird.f32 %v264
  %vm271 = vmor %vm269, %vm270
  %v272 = vsel %vm271, %v264, %v268
  %v273 = vand.u32 2147483647, %v262
  %vm274 = vcmp.eq.f32.partialorder %v273, 8.507059e+37
  %v275 = vand.u32 %v262, 2147483648
  %v276 = vor.u32 1.1754944e-38, %v275
  %v277 = vsel %vm274, %v276, %v272
  %v278 = vmul.f32 1.0, %v277
  %v279 = vrcp.pop %v263
  %v280 = vmul.f32 %v263, %v279
  %v281 = vsub.f32 1.0, %v280
  %v282 = vmul.f32 %v279, %v281
  %v283 = vadd.f32 %v279, %v282
  %vm284 = vweird.f32 %v263
  %vm285 = vweird.f32 %v279
  %vm286 = vmor %vm284, %vm285
  %v287 = vsel %vm286, %v279, %v283
  %v288 = vand.u32 2147483647, %v263
  %vm289 = vcmp.eq.f32.partialorder %v288, 8.507059e+37
  %v290 = vand.u32 %v263, 2147483648
  %v291 = vor.u32 1.1754944e-38, %v290
  %v292 = vsel %vm289, %v291, %v287
  %v293 = vmul.f32 1.0, %v292
  %294 = vst.msk [vmem:[%s9] sm:$0xff] %vm167, %v278
  %295 = vst.msk [vmem:[%s9 + $0x8] sm:$0xff] %vm167, %v293
  // Predicated region
  $region38: #{tpu_custom_call.1} parent=0 // pred_check
    _
  $region39: #{tpu_custom_call.1} parent=0 // pred_check_branch
    %297 = sbr.rel (0) target = $region41
  $region40: #{tpu_custom_call.1} parent=0 // pred_region
    _
  $region41: #{tpu_custom_call.1} parent=0 // pred_fallthru
    _
  // Predicated region
  $region42: #{tpu_custom_call.1} parent=0 // pred_check
    _
  $region43: #{tpu_custom_call.1} parent=0 // pred_check_branch
    %299 = sbr.rel (0) target = $region45
  $region44: #{tpu_custom_call.1} parent=0 // pred_region
    _
  $region45: #{tpu_custom_call.1} parent=0 // pred_fallthru
    _

</llo_original>
